<compile_context>
chip_gen: v7x
topology: tpu7x:2x2x1
jax: 0.10.0
libtpu: 0.0.40
codegen_flags: <defaults>
</compile_context>

<pallas_src>
import functools
import math

import jax
import jax.numpy as jnp
import numpy as np
from jax.experimental import pallas as pl
from jax.experimental.pallas import tpu as pltpu


def _pconv_kernel(w_ref, m_ref, x_ref, o_ref, xp_ref, col_ref, *,
                  C, H, W, ksize, Bt, P, Pt):
    """Convolve a (Bt, C, H*W) slab of images.

    w_ref  : VMEM (C, k*k*C)          f32  im2col weight matrix
    m_ref  : VMEM (k, 1, H*W)         f32  per-column validity mask per kw
    x_ref  : VMEM (Bt, C, H*W)             input slab (first dim_conv channels)
    o_ref  : VMEM (Bt, C, H*W)             output slab (same HBM buffer as x)
    xp_ref : VMEM (Bt, C, P+H*W+Pt)   f32  zero-haloed, lane-padded line buffer
    col_ref: VMEM (Bt, k*k*C, H*W)    f32  im2col RHS
    """
    HW = H * W
    pad = (ksize - 1) // 2
    KK = ksize * ksize * C

    # Zero the halo lanes (never covered by the interior store below).  Cheap,
    # and keeps out-of-image taps correct regardless of grid/core scheduling.
    if P > 0:
        xp_ref[:, :, pl.ds(0, P)] = jnp.zeros((Bt, C, P), jnp.float32)
    if Pt > 0:
        xp_ref[:, :, pl.ds(P + HW, Pt)] = jnp.zeros((Bt, C, Pt), jnp.float32)

    # Stage the whole (Bt, C, HW) slab once at lane offset P (128-aligned).
    xp_ref[:, :, pl.ds(P, HW)] = x_ref[...].astype(jnp.float32)

    # Per-column masks: only taps with a horizontal offset need them (vertical
    # overflow reads the zeroed halo).  Loaded once per grid step.
    col_mask = [m_ref[kw] if kw != pad else None for kw in range(ksize)]

    # im2col: stack the k*k lane-shifted windows along the contraction axis.
    # (Micro-opt left out: load only the k row-shifted windows and derive the
    #  +-kw shifts with pltpu.roll; the wrapped lanes are zeroed by the same
    #  column masks.)
    for kh in range(ksize):
        for kw in range(ksize):
            j = kh * ksize + kw
            off = (kh - pad) * W + (kw - pad)
            win = xp_ref[:, :, pl.ds(P + off, HW)]        # (Bt, C, HW)
            if col_mask[kw] is not None:                  # row-wrap columns -> 0
                win = win * col_mask[kw]
            col_ref[:, pl.ds(j * C, C), :] = win

    # One batched MXU contraction per grid step:
    #   (Bt, C, k*k*C) x (Bt, k*k*C, HW) -> (Bt, C, HW)
    w_b = jnp.broadcast_to(w_ref[...], (Bt, C, KK))
    out = jax.lax.dot_general(
        w_b, col_ref[...],
        dimension_numbers=(((2,), (1,)), ((0,), (0,))),
        preferred_element_type=jnp.float32)
    o_ref[...] = out.astype(o_ref.dtype)


def pconv2_1(x, weight, n_div=2, max_block_batch=8,
             vmem_block_budget_bytes=8 << 20):
    """PConv2_1 forward.

    x      : (N, dim, H, W); weight: (C, C, k, k) OIHW with C = dim // n_div.

    For best performance donate x at the jit call site
    (jax.jit(pconv2_1, donate_argnums=0)): the kernel aliases x to its output
    so the untouched passthrough channels never cross HBM; without donation
    XLA inserts a defensive copy of x (correct but slower).
    """
    N, dim, H, W = x.shape
    C = dim // n_div
    assert C * n_div == dim, "dim must be divisible by n_div"
    assert weight.shape[:2] == (C, C) and weight.shape[2] == weight.shape[3]
    ksize = int(weight.shape[-1])
    pad = (ksize - 1) // 2
    HW = H * W
    # Sublane-tiling requirement of the (Bt, C, HW) block (dtype-dependent).
    sub = 8 * max(1, 4 // x.dtype.itemsize)
    assert C % sub == 0, (
        f"dim // n_div must be a multiple of {sub} for dtype {x.dtype}")

    # Line-buffer halos: leading halo rounded to 128 lanes so the interior
    # store stays lane-aligned; trailing halo only needs pad*(W+1) lanes.
    halo = pad * (W + 1)
    P = ((halo + 127) // 128) * 128 if pad > 0 else 0
    Pt = halo

    # Images per grid step: VMEM-budgeted (double-buffered in/out blocks +
    # line buffer + im2col scratch), capped so grid keeps >= 2 steps when
    # N > 1 (v7x has 2 TensorCores).  Bt does NOT need to divide N.
    itemsize = x.dtype.itemsize
    per_image = (4 * C * HW * itemsize                    # 2x dbl-buffered in/out
                 + C * (P + HW + Pt) * 4                  # line buffer
                 + (ksize * ksize + 1) * C * HW * 4)      # im2col + result
    cap = max(1, vmem_block_budget_bytes // max(per_image, 1))
    Bt = int(max(1, min(max_block_batch, cap, max(1, N // 2))))
    grid0 = pl.cdiv(N, Bt)

    # Weight as a single (C, k*k*C) matrix; column order matches the im2col
    # stacking (tap-major, then input channel).
    w_big = jnp.transpose(weight.astype(jnp.float32), (0, 2, 3, 1)).reshape(
        C, ksize * ksize * C)

    # Per-column validity masks, one per horizontal tap offset kw.
    masks = np.zeros((ksize, 1, HW), np.float32)
    for kw in range(ksize):
        dw = kw - pad
        m = np.zeros((H, W), np.float32)
        m[:, max(0, -dw):min(W, W - dw)] = 1.0
        masks[kw, 0] = m.reshape(HW)
    masks = jnp.asarray(masks)

    x_flat = x.reshape(N, dim, HW)     # free; lane-dense layout for the kernel

    kernel = functools.partial(
        _pconv_kernel, C=C, H=H, W=W, ksize=ksize, Bt=Bt, P=P, Pt=Pt)

    cost = pl.CostEstimate(
        flops=2 * N * C * C * ksize * ksize * HW,
        transcendentals=0,
        bytes_accessed=2 * N * C * HW * itemsize + w_big.size * 4 + masks.size * 4)

    y_flat = pl.pallas_call(
        kernel,
        out_shape=jax.ShapeDtypeStruct((N, dim, HW), x.dtype),
        grid=(grid0,),
        in_specs=[
            pl.BlockSpec((C, ksize * ksize * C), lambda i: (0, 0)),
            pl.BlockSpec((ksize, 1, HW), lambda i: (0, 0, 0)),
            # Only the convolved channel slab is staged through VMEM.
            pl.BlockSpec((Bt, C, HW), lambda i: (i, 0, 0)),
        ],
        out_specs=pl.BlockSpec((Bt, C, HW), lambda i: (i, 0, 0)),
        scratch_shapes=[
            pltpu.VMEM((Bt, C, P + HW + Pt), jnp.float32),          # line buffer
            pltpu.VMEM((Bt, ksize * ksize * C, HW), jnp.float32),   # im2col RHS
        ],
        # x aliases the output: the never-visited passthrough channel blocks
        # keep their input values with zero extra HBM traffic (donate x!).
        input_output_aliases={2: 0},
        compiler_params=pltpu.CompilerParams(
            dimension_semantics=("parallel",),
            vmem_limit_bytes=32 << 20,
        ),
        cost_estimate=cost,
    )(w_big, masks, x_flat)

    return y_flat.reshape(N, dim, H, W)


if __name__ == "__main__":
    # Small shapes consistent with the module; dim_conv = dim // 2 = 8.
    N, dim, H, W = 2, 16, 16, 16
    n_div = 2
    C = dim // n_div
    ksize = 3

    key = jax.random.PRNGKey(0)
    kx, kw_key = jax.random.split(key)
    x = jax.random.normal(kx, (N, dim, H, W), dtype=jnp.float32)

    # Deterministic Kaiming-uniform-like init (nn.Conv2d default scale).
    fan_in = C * ksize * ksize
    bound = 1.0 / math.sqrt(fan_in)
    weight = jax.random.uniform(
        kw_key, (C, C, ksize, ksize), minval=-bound, maxval=bound,
        dtype=jnp.float32)

    # Reference (plain JAX/XLA), computed BEFORE the donating call consumes x.
    y1 = jax.lax.conv_general_dilated(
        x[:, :C], weight, window_strides=(1, 1), padding="SAME",
        dimension_numbers=("NCHW", "OIHW", "NCHW"))
    ref = jax.block_until_ready(jnp.concatenate([y1, x[:, C:]], axis=1))

    # Donate x so input_output_aliases does not force a defensive copy of the
    # passthrough half.
    fwd = jax.jit(functools.partial(pconv2_1, n_div=n_div), donate_argnums=0)
    out = jax.block_until_ready(fwd(x, weight))

    assert out.shape == (N, dim, H, W) and out.dtype == ref.dtype
    assert jnp.allclose(out, ref, atol=1e-4, rtol=1e-4), "mismatch vs reference"
    print("KERNEL_OK")
</pallas_src>

<mosaic_0001>
module attributes {stable_mosaic.version = 11 : i64} {
  func.func @_pconv_kernel(%arg0: i32, %arg1: memref<8x72xf32, #tpu.memory_space<vmem>>, %arg2: memref<3x1x256xf32, #tpu.memory_space<vmem>>, %arg3: memref<1x8x256xf32, #tpu.memory_space<vmem>>, %arg4: memref<1x8x256xf32, #tpu.memory_space<vmem>>, %arg5: memref<1x8x401xf32, #tpu.memory_space<vmem>>, %arg6: memref<1x72x256xf32, #tpu.memory_space<vmem>>) attributes {dimension_semantics = [#tpu.dimension_semantics<parallel>], iteration_bounds = array<i64: 2>, scalar_prefetch = 0 : i64, scratch_operands = 2 : i64, tpu.core_type = #tpu.core_type<tc>, window_params = [{pipeline_mode = #tpu.pipeline_mode<synchronous>, transform_indices = @transform_0, window_bounds = array<i64: 8, 72>}, {pipeline_mode = #tpu.pipeline_mode<synchronous>, transform_indices = @transform_1, window_bounds = array<i64: 3, 1, 256>}, {transform_indices = @transform_2, window_bounds = array<i64: 1, 8, 256>}, {transform_indices = @transform_3, window_bounds = array<i64: 1, 8, 256>}]} {
    %cst = arith.constant 0.000000e+00 : f32
    %0 = vector.broadcast %cst : f32 to vector<1x8x128xf32>
    %c0 = arith.constant 0 : index
    %c0_0 = arith.constant 0 : index
    %c0_1 = arith.constant 0 : index
    %1 = vector.load %arg5[%c0, %c0_0, %c0_1] : memref<1x8x401xf32, #tpu.memory_space<vmem>>, vector<1x8x128xf32>
    tpu.vector_store %arg5[%c0, %c0_0, %c0_1], %0 {strides = array<i32>} : memref<1x8x401xf32, #tpu.memory_space<vmem>>, vector<1x8x128xf32>,
    %cst_2 = arith.constant 0.000000e+00 : f32
    %2 = vector.broadcast %cst_2 : f32 to vector<1x8x17xf32>
    %c0_3 = arith.constant 0 : index
    %c0_4 = arith.constant 0 : index
    %c384 = arith.constant 384 : index
    %3 = vector.load %arg5[%c0_3, %c0_4, %c384] : memref<1x8x401xf32, #tpu.memory_space<vmem>>, vector<1x8x17xf32>
    tpu.vector_store %arg5[%c0_3, %c0_4, %c384], %2 {strides = array<i32>} : memref<1x8x401xf32, #tpu.memory_space<vmem>>, vector<1x8x17xf32>,
    %c0_5 = arith.constant 0 : index
    %c0_6 = arith.constant 0 : index
    %c0_7 = arith.constant 0 : index
    %4 = vector.load %arg3[%c0_5, %c0_6, %c0_7] : memref<1x8x256xf32, #tpu.memory_space<vmem>>, vector<1x8x256xf32>
    %c0_8 = arith.constant 0 : index
    %c0_9 = arith.constant 0 : index
    %c128 = arith.constant 128 : index
    %5 = vector.load %arg5[%c0_8, %c0_9, %c128] : memref<1x8x401xf32, #tpu.memory_space<vmem>>, vector<1x8x256xf32>
    tpu.vector_store %arg5[%c0_8, %c0_9, %c128], %4 {strides = array<i32>} : memref<1x8x401xf32, #tpu.memory_space<vmem>>, vector<1x8x256xf32>,
    %c0_10 = arith.constant 0 : index
    %c0_11 = arith.constant 0 : index
    %c0_12 = arith.constant 0 : index
    %6 = vector.load %arg2[%c0_10, %c0_11, %c0_12] : memref<3x1x256xf32, #tpu.memory_space<vmem>>, vector<1x1x256xf32>
    %7 = vector.shape_cast %6 : vector<1x1x256xf32> to vector<1x256xf32>
    %c2 = arith.constant 2 : index
    %c0_13 = arith.constant 0 : index
    %c0_14 = arith.constant 0 : index
    %8 = vector.load %arg2[%c2, %c0_13, %c0_14] : memref<3x1x256xf32, #tpu.memory_space<vmem>>, vector<1x1x256xf32>
    %9 = vector.shape_cast %8 : vector<1x1x256xf32> to vector<1x256xf32>
    %c0_15 = arith.constant 0 : index
    %c0_16 = arith.constant 0 : index
    %c111 = arith.constant 111 : index
    %10 = vector.load %arg5[%c0_15, %c0_16, %c111] : memref<1x8x401xf32, #tpu.memory_space<vmem>>, vector<1x8x256xf32>
    %11 = vector.shape_cast %7 : vector<1x256xf32> to vector<1x1x256xf32>
    %12 = vector.broadcast %11 : vector<1x1x256xf32> to vector<1x8x256xf32>
    %13 = arith.mulf %10, %12 : vector<1x8x256xf32>
    %c0_17 = arith.constant 0 : index
    %c0_18 = arith.constant 0 : index
    %c0_19 = arith.constant 0 : index
    %14 = vector.load %arg6[%c0_17, %c0_18, %c0_19] : memref<1x72x256xf32, #tpu.memory_space<vmem>>, vector<1x8x256xf32>
    tpu.vector_store %arg6[%c0_17, %c0_18, %c0_19], %13 {strides = array<i32>} : memref<1x72x256xf32, #tpu.memory_space<vmem>>, vector<1x8x256xf32>,
    %c0_20 = arith.constant 0 : index
    %c0_21 = arith.constant 0 : index
    %c112 = arith.constant 112 : index
    %15 = vector.load %arg5[%c0_20, %c0_21, %c112] : memref<1x8x401xf32, #tpu.memory_space<vmem>>, vector<1x8x256xf32>
    %c0_22 = arith.constant 0 : index
    %c8 = arith.constant 8 : index
    %c0_23 = arith.constant 0 : index
    %16 = vector.load %arg6[%c0_22, %c8, %c0_23] : memref<1x72x256xf32, #tpu.memory_space<vmem>>, vector<1x8x256xf32>
    tpu.vector_store %arg6[%c0_22, %c8, %c0_23], %15 {strides = array<i32>} : memref<1x72x256xf32, #tpu.memory_space<vmem>>, vector<1x8x256xf32>,
    %c0_24 = arith.constant 0 : index
    %c0_25 = arith.constant 0 : index
    %c113 = arith.constant 113 : index
    %17 = vector.load %arg5[%c0_24, %c0_25, %c113] : memref<1x8x401xf32, #tpu.memory_space<vmem>>, vector<1x8x256xf32>
    %18 = vector.shape_cast %9 : vector<1x256xf32> to vector<1x1x256xf32>
    %19 = vector.broadcast %18 : vector<1x1x256xf32> to vector<1x8x256xf32>
    %20 = arith.mulf %17, %19 : vector<1x8x256xf32>
    %c0_26 = arith.constant 0 : index
    %c16 = arith.constant 16 : index
    %c0_27 = arith.constant 0 : index
    %21 = vector.load %arg6[%c0_26, %c16, %c0_27] : memref<1x72x256xf32, #tpu.memory_space<vmem>>, vector<1x8x256xf32>
    tpu.vector_store %arg6[%c0_26, %c16, %c0_27], %20 {strides = array<i32>} : memref<1x72x256xf32, #tpu.memory_space<vmem>>, vector<1x8x256xf32>,
    %c0_28 = arith.constant 0 : index
    %c0_29 = arith.constant 0 : index
    %c127 = arith.constant 127 : index
    %22 = vector.load %arg5[%c0_28, %c0_29, %c127] : memref<1x8x401xf32, #tpu.memory_space<vmem>>, vector<1x8x256xf32>
    %23 = vector.shape_cast %7 : vector<1x256xf32> to vector<1x1x256xf32>
    %24 = vector.broadcast %23 : vector<1x1x256xf32> to vector<1x8x256xf32>
    %25 = arith.mulf %22, %24 : vector<1x8x256xf32>
    %c0_30 = arith.constant 0 : index
    %c24 = arith.constant 24 : index
    %c0_31 = arith.constant 0 : index
    %26 = vector.load %arg6[%c0_30, %c24, %c0_31] : memref<1x72x256xf32, #tpu.memory_space<vmem>>, vector<1x8x256xf32>
    tpu.vector_store %arg6[%c0_30, %c24, %c0_31], %25 {strides = array<i32>} : memref<1x72x256xf32, #tpu.memory_space<vmem>>, vector<1x8x256xf32>,
    %c0_32 = arith.constant 0 : index
    %c0_33 = arith.constant 0 : index
    %c128_34 = arith.constant 128 : index
    %27 = vector.load %arg5[%c0_32, %c0_33, %c128_34] : memref<1x8x401xf32, #tpu.memory_space<vmem>>, vector<1x8x256xf32>
    %c0_35 = arith.constant 0 : index
    %c32 = arith.constant 32 : index
    %c0_36 = arith.constant 0 : index
    %28 = vector.load %arg6[%c0_35, %c32, %c0_36] : memref<1x72x256xf32, #tpu.memory_space<vmem>>, vector<1x8x256xf32>
    tpu.vector_store %arg6[%c0_35, %c32, %c0_36], %27 {strides = array<i32>} : memref<1x72x256xf32, #tpu.memory_space<vmem>>, vector<1x8x256xf32>,
    %c0_37 = arith.constant 0 : index
    %c0_38 = arith.constant 0 : index
    %c129 = arith.constant 129 : index
    %29 = vector.load %arg5[%c0_37, %c0_38, %c129] : memref<1x8x401xf32, #tpu.memory_space<vmem>>, vector<1x8x256xf32>
    %30 = vector.shape_cast %9 : vector<1x256xf32> to vector<1x1x256xf32>
    %31 = vector.broadcast %30 : vector<1x1x256xf32> to vector<1x8x256xf32>
    %32 = arith.mulf %29, %31 : vector<1x8x256xf32>
    %c0_39 = arith.constant 0 : index
    %c40 = arith.constant 40 : index
    %c0_40 = arith.constant 0 : index
    %33 = vector.load %arg6[%c0_39, %c40, %c0_40] : memref<1x72x256xf32, #tpu.memory_space<vmem>>, vector<1x8x256xf32>
    tpu.vector_store %arg6[%c0_39, %c40, %c0_40], %32 {strides = array<i32>} : memref<1x72x256xf32, #tpu.memory_space<vmem>>, vector<1x8x256xf32>,
    %c0_41 = arith.constant 0 : index
    %c0_42 = arith.constant 0 : index
    %c143 = arith.constant 143 : index
    %34 = vector.load %arg5[%c0_41, %c0_42, %c143] : memref<1x8x401xf32, #tpu.memory_space<vmem>>, vector<1x8x256xf32>
    %35 = vector.shape_cast %7 : vector<1x256xf32> to vector<1x1x256xf32>
    %36 = vector.broadcast %35 : vector<1x1x256xf32> to vector<1x8x256xf32>
    %37 = arith.mulf %34, %36 : vector<1x8x256xf32>
    %c0_43 = arith.constant 0 : index
    %c48 = arith.constant 48 : index
    %c0_44 = arith.constant 0 : index
    %38 = vector.load %arg6[%c0_43, %c48, %c0_44] : memref<1x72x256xf32, #tpu.memory_space<vmem>>, vector<1x8x256xf32>
    tpu.vector_store %arg6[%c0_43, %c48, %c0_44], %37 {strides = array<i32>} : memref<1x72x256xf32, #tpu.memory_space<vmem>>, vector<1x8x256xf32>,
    %c0_45 = arith.constant 0 : index
    %c0_46 = arith.constant 0 : index
    %c144 = arith.constant 144 : index
    %39 = vector.load %arg5[%c0_45, %c0_46, %c144] : memref<1x8x401xf32, #tpu.memory_space<vmem>>, vector<1x8x256xf32>
    %c0_47 = arith.constant 0 : index
    %c56 = arith.constant 56 : index
    %c0_48 = arith.constant 0 : index
    %40 = vector.load %arg6[%c0_47, %c56, %c0_48] : memref<1x72x256xf32, #tpu.memory_space<vmem>>, vector<1x8x256xf32>
    tpu.vector_store %arg6[%c0_47, %c56, %c0_48], %39 {strides = array<i32>} : memref<1x72x256xf32, #tpu.memory_space<vmem>>, vector<1x8x256xf32>,
    %c0_49 = arith.constant 0 : index
    %c0_50 = arith.constant 0 : index
    %c145 = arith.constant 145 : index
    %41 = vector.load %arg5[%c0_49, %c0_50, %c145] : memref<1x8x401xf32, #tpu.memory_space<vmem>>, vector<1x8x256xf32>
    %42 = vector.shape_cast %9 : vector<1x256xf32> to vector<1x1x256xf32>
    %43 = vector.broadcast %42 : vector<1x1x256xf32> to vector<1x8x256xf32>
    %44 = arith.mulf %41, %43 : vector<1x8x256xf32>
    %c0_51 = arith.constant 0 : index
    %c64 = arith.constant 64 : index
    %c0_52 = arith.constant 0 : index
    %45 = vector.load %arg6[%c0_51, %c64, %c0_52] : memref<1x72x256xf32, #tpu.memory_space<vmem>>, vector<1x8x256xf32>
    tpu.vector_store %arg6[%c0_51, %c64, %c0_52], %44 {strides = array<i32>} : memref<1x72x256xf32, #tpu.memory_space<vmem>>, vector<1x8x256xf32>,
    %c0_53 = arith.constant 0 : index
    %c0_54 = arith.constant 0 : index
    %46 = vector.load %arg1[%c0_53, %c0_54] : memref<8x72xf32, #tpu.memory_space<vmem>>, vector<8x72xf32>
    %47 = vector.shape_cast %46 : vector<8x72xf32> to vector<1x8x72xf32>
    %c0_55 = arith.constant 0 : index
    %c0_56 = arith.constant 0 : index
    %c0_57 = arith.constant 0 : index
    %48 = vector.load %arg6[%c0_55, %c0_56, %c0_57] : memref<1x72x256xf32, #tpu.memory_space<vmem>>, vector<1x72x256xf32>
    %cst_58 = arith.constant dense<0.000000e+00> : vector<1x8x256xf32>
    %49 = tpu.matmul %47, %48, %cst_58 {dimension_numbers = #tpu.dot_dimension_numbers<[2], [1], [1], [2], [0, 0, 0, 1, 1, 2], [0], [0]>} : vector<1x8x72xf32>, vector<1x72x256xf32>, vector<1x8x256xf32> -> vector<1x8x256xf32>
    %c0_59 = arith.constant 0 : index
    %c0_60 = arith.constant 0 : index
    %c0_61 = arith.constant 0 : index
    %50 = vector.load %arg4[%c0_59, %c0_60, %c0_61] : memref<1x8x256xf32, #tpu.memory_space<vmem>>, vector<1x8x256xf32>
    tpu.vector_store %arg4[%c0_59, %c0_60, %c0_61], %49 {strides = array<i32>} : memref<1x8x256xf32, #tpu.memory_space<vmem>>, vector<1x8x256xf32>,
    return
  }
  func.func @transform_0(%arg0: i32) -> (i32, i32) {
    %c0_i32 = arith.constant 0 : i32
    %c0_i32_0 = arith.constant 0 : i32
    %c0_i32_1 = arith.constant 0 : i32
    return %c0_i32, %c0_i32_0 : i32, i32
  }
  func.func @transform_1(%arg0: i32) -> (i32, i32, i32) {
    %c0_i32 = arith.constant 0 : i32
    %c0_i32_0 = arith.constant 0 : i32
    %c0_i32_1 = arith.constant 0 : i32
    %c0_i32_2 = arith.constant 0 : i32
    return %c0_i32, %c0_i32_0, %c0_i32_1 : i32, i32, i32
  }
  func.func @transform_2(%arg0: i32) -> (i32, i32, i32) {
    %c0_i32 = arith.constant 0 : i32
    %c0_i32_0 = arith.constant 0 : i32
    %c0_i32_1 = arith.constant 0 : i32
    return %arg0, %c0_i32, %c0_i32_0 : i32, i32, i32
  }
  func.func @transform_3(%arg0: i32) -> (i32, i32, i32) {
    %c0_i32 = arith.constant 0 : i32
    %c0_i32_0 = arith.constant 0 : i32
    %c0_i32_1 = arith.constant 0 : i32
    return %arg0, %c0_i32, %c0_i32_0 : i32, i32, i32
  }
}

</mosaic_0001>

<llo_original>
// kernel: pconv2_1.1
$region0: #{pconv2_1.1}
  #allocation0 [shape = 'u32[]', space=smem, size = 0x4, offset = 0x4, fixed_abs, tag = 'smem constant byte address 0x4 - core index']
  #allocation1 [shape = 'u32[144,128]{1,0:T(1,128)}', space=vmem, size = 0x12000, scoped, tag = 'internal scratch']
  #allocation2 [shape = 'f32[1,8,401]{2,1,0:T(8,128)}', space=vmem, size = 0x4000, scoped, tag = 'scratch operand']
  #allocation3 [shape = 'f32[1,72,256]{2,1,0:T(8,128)}', space=vmem, size = 0x12000, scoped, tag = 'scratch operand']
  %s0 = inlined_call_operand.vmem [shape: f32[8,72], index: 0, kind: input, shape index: {}]
  %s1 = inlined_call_operand.vmem [shape: f32[3,1,256], index: 1, kind: input, shape index: {}]
  %s2 = inlined_call_operand.vmem [shape: f32[2,16,256], index: 2, kind: input, shape index: {}, may-alias: {2,3}]
  %s3 = inlined_call_operand.vmem [shape: f32[2,16,256], index: 3, kind: output, shape index: {}, may-alias: {2,3}]
  %s4 = sld [smem:[#allocation0]]
  $region45: #{pconv2_1.1} parent=0
    _
  %s6 = ssub.s32 1, %s4
  %s7 = scalar_select 0, %s6, %s4
  loop: start=0, step=1, limit=4
  $region2: #{pconv2_1.1} parent=0 // loop_pre_header
    _
  $region3: #{pconv2_1.1} parent=0 // loop_header
    %s9 = sphi 0, %s13
    %p10 = scmp.ge.s32.totalorder %s9, 4
    %s17 = sphi 0, %s17
    %s19 = sphi 0, %s17
    %s20 = sphi 0, %s19
    %s34 = sphi 0, %s20
    %s38 = sphi 0, %s38
    %s40 = sphi 0, %s38
    %s41 = sphi 0, %s40
    %s55 = sphi 0, %s41
    %s61 = sphi 0, %s63
    %s64 = sphi 0, %s61
    %s65 = sphi 0, %s64
    %s81 = sphi 0, %s65
    %s87 = sphi 0, %s89
    %s90 = sphi 0, %s87
    %s91 = sphi 0, %s90
    %s107 = sphi 0, %s91
  $region4: #{pconv2_1.1} parent=0 // loop_header_branch
    %12 = sbr.rel (%p10) target = $region8
  $region5: #{pconv2_1.1} parent=0 // loop_body
    %s14 = ssub.s32 %s9, 1
    %s15 = ssub.s32 %s9, 2
    %s16 = sadd.s32 %s9, 1
    %s18 = sadd.s32 %s17, 1
    %p21 = scmp.eq.s32.totalorder %s9, 1
    %p22 = scmp.ne.s32.totalorder %s17, %s19
    %p23 = scmp.eq.s32.totalorder %s9, 0
    %p24 = por %p22, %p23
    %p25 = scmp.ne.s32.totalorder %s17, %s19
    %p26 = scmp.eq.s32.totalorder %s14, 1
    %p27 = por %p25, %p26
    %p28 = scmp.ne.s32.totalorder %s19, %s20
    %p29 = scmp.eq.s32.totalorder %s14, 0
    %p30 = por %p28, %p29
    %p31 = scmp.ne.s32.totalorder %s19, %s20
    %p32 = scmp.eq.s32.totalorder %s15, 1
    %p33 = por %p31, %p32
    %p35 = scmp.ne.s32.totalorder %s20, %s34
    %p36 = scmp.eq.s32.totalorder %s15, 0
    %p37 = por %p35, %p36
    %s39 = sadd.s32 %s38, 1
    %p42 = scmp.eq.s32.totalorder %s9, 1
    %p43 = scmp.ne.s32.totalorder %s38, %s40
    %p44 = scmp.eq.s32.totalorder %s9, 0
    %p45 = por %p43, %p44
    %p46 = scmp.ne.s32.totalorder %s38, %s40
    %p47 = scmp.eq.s32.totalorder %s14, 1
    %p48 = por %p46, %p47
    %p49 = scmp.ne.s32.totalorder %s40, %s41
    %p50 = scmp.eq.s32.totalorder %s14, 0
    %p51 = por %p49, %p50
    %p52 = scmp.ne.s32.totalorder %s40, %s41
    %p53 = scmp.eq.s32.totalorder %s15, 1
    %p54 = por %p52, %p53
    %p56 = scmp.ne.s32.totalorder %s41, %s55
    %p57 = scmp.eq.s32.totalorder %s15, 0
    %p58 = por %p56, %p57
    %s59 = ssub.s32 %s9, %s16
    %p60 = scmp.eq.s32.totalorder %s59, 0
    %s62 = sadd.s32 %s61, 1
    %s63 = scalar_select %p60, %s61, %s62
    %p66 = pneg %p60
    %p67 = scmp.eq.s32.totalorder %s9, 1
    %p68 = por %p66, %p67
    %p69 = scmp.ne.s32.totalorder %s61, %s64
    %p70 = scmp.eq.s32.totalorder %s9, 0
    %p71 = por %p69, %p70
    %p72 = scmp.ne.s32.totalorder %s61, %s64
    %p73 = scmp.eq.s32.totalorder %s14, 1
    %p74 = por %p72, %p73
    %p75 = scmp.ne.s32.totalorder %s64, %s65
    %p76 = scmp.eq.s32.totalorder %s14, 0
    %p77 = por %p75, %p76
    %p78 = scmp.ne.s32.totalorder %s64, %s65
    %p79 = scmp.eq.s32.totalorder %s15, 1
    %p80 = por %p78, %p79
    %p82 = scmp.ne.s32.totalorder %s65, %s81
    %p83 = scmp.eq.s32.totalorder %s15, 0
    %p84 = por %p82, %p83
    %s85 = ssub.s32 %s9, %s16
    %p86 = scmp.eq.s32.totalorder %s85, 0
    %s88 = sadd.s32 %s87, 1
    %s89 = scalar_select %p86, %s87, %s88
    %p92 = pneg %p86
    %p93 = scmp.eq.s32.totalorder %s9, 1
    %p94 = por %p92, %p93
    %p95 = scmp.ne.s32.totalorder %s87, %s90
    %p96 = scmp.eq.s32.totalorder %s9, 0
    %p97 = por %p95, %p96
    %p98 = scmp.ne.s32.totalorder %s87, %s90
    %p99 = scmp.eq.s32.totalorder %s14, 1
    %p100 = por %p98, %p99
    %p101 = scmp.ne.s32.totalorder %s90, %s91
    %p102 = scmp.eq.s32.totalorder %s14, 0
    %p103 = por %p101, %p102
    %p104 = scmp.ne.s32.totalorder %s90, %s91
    %p105 = scmp.eq.s32.totalorder %s15, 1
    %p106 = por %p104, %p105
    %p108 = scmp.ne.s32.totalorder %s91, %s107
    %p109 = scmp.eq.s32.totalorder %s15, 0
    %p110 = por %p108, %p109
    %p111 = scmp.le.s32.totalorder 1, %s9
    %p112 = scmp.lt.s32.totalorder %s9, 3
    %p113 = pnand %p111, %p112
    %p114 = pneg %p113
    // Predicated region
    $region9: #{pconv2_1.1} parent=5 // pred_check
      _
    $region10: #{pconv2_1.1} parent=5 // pred_check_branch
      %116 = sbr.rel (%p113) target = $region12
    $region11: #{pconv2_1.1} parent=5 // pred_region
      %s117 = ssub.s32 %s9, 1
      // Predicated region
      $region13: #{pconv2_1.1} parent=11 // pred_check
        %p118 = pneg %p30
      $region14: #{pconv2_1.1} parent=11 // pred_check_branch
        %120 = sbr.rel (%p118) target = $region16
      $region15: #{pconv2_1.1} parent=11 // pred_region
        _
      $region16: #{pconv2_1.1} parent=11 // pred_fallthru
        _
      // Predicated region
      $region17: #{pconv2_1.1} parent=11 // pred_check
        %p121 = pneg %p51
      $region18: #{pconv2_1.1} parent=11 // pred_check_branch
        %123 = sbr.rel (%p121) target = $region20
      $region19: #{pconv2_1.1} parent=11 // pred_region
        _
      $region20: #{pconv2_1.1} parent=11 // pred_fallthru
        _
    $region12: #{pconv2_1.1} parent=5 // pred_fallthru
      _
    %p124 = scmp.lt.s32.totalorder %s9, 2
    // Predicated region
    $region21: #{pconv2_1.1} parent=5 // pred_check
      %p125 = pneg %p124
    $region22: #{pconv2_1.1} parent=5 // pred_check_branch
      %127 = sbr.rel (%p125) target = $region24
    $region23: #{pconv2_1.1} parent=5 // pred_region
      // Predicated region
      $region25: #{pconv2_1.1} parent=23 // pred_check
        %p128 = pneg %p71
      $region26: #{pconv2_1.1} parent=23 // pred_check_branch
        %130 = sbr.rel (%p128) target = $region28
      $region27: #{pconv2_1.1} parent=23 // pred_region
        %p131 = scmp.lt.s32.totalorder %s9, 1
        %s132 = scalar_select %p131, %s9, 1
        %s133 = smul.addr %s132, 4
        %s134 = smul.addr %s133, 8
        %s135 = scalar_lea.vmem %s2, %s134
      $region28: #{pconv2_1.1} parent=23 // pred_fallthru
        _
    $region24: #{pconv2_1.1} parent=5 // pred_fallthru
      _
    %p136 = scmp.le.s32.totalorder 1, %s9
    %p137 = scmp.lt.s32.totalorder %s9, 3
    %p138 = pnand %p136, %p137
    %p139 = pneg %p138
    // Predicated region
    $region29: #{pconv2_1.1} parent=5 // pred_check
      _
    $region30: #{pconv2_1.1} parent=5 // pred_check_branch
      %141 = sbr.rel (%p138) target = $region32
    $region31: #{pconv2_1.1} parent=5 // pred_region
      %s142 = ssub.s32 %s9, 1
      %p143 = pneg %p30
      %p144 = pneg %p27
      %p145 = pneg %p51
      %p146 = pneg %p48
      %p147 = scmp.lt.s32.totalorder %s14, 1
      %s148 = scalar_select %p147, %s14, 1
      %s149 = smul.addr %s148, 4
      %s150 = smul.addr %s149, 8
      %s151 = scalar_lea.vmem %s2, %s150
      %p152 = pneg %p77
      %p153 = pneg %p74
      %p154 = pneg %p103
      %p155 = pneg %p100
      %p156 = scmp.lt.s32.totalorder %s14, 1
      %s157 = scalar_select %p156, %s14, 1
      %s158 = smul.addr %s157, 4
      %s159 = smul.addr %s158, 8
      %s160 = scalar_lea.vmem %s3, %s159
      %p161 = scmp.lt.s32.totalorder %s14, 1
      %s162 = scalar_select %p161, %s14, 1
      %s163 = smul.addr %s162, 4
      %s164 = smul.addr %s163, 8
      %s165 = scalar_lea.vmem %s2, %s164
      %p166 = scmp.lt.s32.totalorder %s14, 1
      %s167 = scalar_select %p166, %s14, 1
      %s168 = smul.addr %s167, 4
      %s169 = smul.addr %s168, 8
      %s170 = scalar_lea.vmem %s3, %s169
      %171 = vst [vmem:[#allocation2] sm:$0xff] 0.0
      %vm172 = vcmask 138240
      %173 = vst.msk [vmem:[#allocation2 + $0x18] sm:$0xff] %vm172, 0.0
      %v174 = vld [vmem:[%s165] sm:$0xff]
      %v175 = vld [vmem:[%s165 + $0x8] sm:$0xff]
      %176 = vst [vmem:[#allocation2 + $0x8] sm:$0xff] %v174
      %177 = vst [vmem:[#allocation2 + $0x10] sm:$0xff] %v175
      %v178 = vld [vmem:[%s1] sm:$0x3]
      %s179 = scalar_lea.vmem %s1, 4
      %v180 = vld [vmem:[%s179] sm:$0x3]
      %v181 = vld [vmem:[#allocation2] sm:$0xff]
      %v182 = vld [vmem:[#allocation2 + $0x8] sm:$0xff]
      %v183 = vld [vmem:[#allocation2 + $0x10] sm:$0xff]
      %v185 = vlaneseq
      %v186 = vshrl.u32 %v185, 7
      %v187 = vsub.s32 0, %v186
      %v188 = vrot.slane %v178, %v187
      %v189 = vlaneseq
      %v190 = vshrl.u32 %v189, 7
      %v191 = vsub.s32 1, %v190
      %v192 = vrot.slane %v178, %v191
      %193 = vrot.lane.b32.xlu0 %v188, 111
      %v194 = vpop.permute.xlu0 %193
      %195 = vrot.lane.b32.xlu0 %v192, 111
      %v196 = vpop.permute.xlu0 %195
      %vm197 = vcmask 908288
      %v198 = vsel %vm197, %v194, %v196
      %v202 = vmul.f32 %v181, %v194
      %v203 = vmul.f32 %v182, %v198
      %v204 = vmul.f32 %v183, %v196
      %208 = vrot.lane.b32.xlu0 %v202, 17
      %v209 = vpop.permute.xlu0 %208
      %210 = vrot.lane.b32.xlu0 %v203, 17
      %v211 = vpop.permute.xlu0 %210
      %212 = vrot.lane.b32.xlu0 %v204, 17
      %v213 = vpop.permute.xlu0 %212
      %v214 = vsel %vm172, %v209, %v211
      %v215 = vsel %vm172, %v211, %v213
      %218 = vst [vmem:[#allocation3] sm:$0xff] %v214
      %219 = vst [vmem:[#allocation3 + $0x8] sm:$0xff] %v215
      %v220 = vld [vmem:[#allocation2] sm:$0xff]
      %v221 = vld [vmem:[#allocation2 + $0x8] sm:$0xff]
      %v222 = vld [vmem:[#allocation2 + $0x10] sm:$0xff]
      %226 = vrot.lane.b32.xlu0 %v220, 16
      %v227 = vpop.permute.xlu0 %226
      %228 = vrot.lane.b32.xlu0 %v221, 16
      %v229 = vpop.permute.xlu0 %228
      %230 = vrot.lane.b32.xlu0 %v222, 16
      %v231 = vpop.permute.xlu0 %230
      %vm232 = vcmask 130048
      %v233 = vsel %vm232, %v227, %v229
      %v234 = vsel %vm232, %v229, %v231
      %237 = vst [vmem:[#allocation3 + $0x10] sm:$0xff] %v233
      %238 = vst [vmem:[#allocation3 + $0x18] sm:$0xff] %v234
      %v239 = vld [vmem:[#allocation2] sm:$0xff]
      %v240 = vld [vmem:[#allocation2 + $0x8] sm:$0xff]
      %v241 = vld [vmem:[#allocation2 + $0x10] sm:$0xff]
      %v243 = vlaneseq
      %v244 = vshrl.u32 %v243, 7
      %v245 = vsub.s32 0, %v244
      %v246 = vrot.slane %v180, %v245
      %v247 = vlaneseq
      %v248 = vshrl.u32 %v247, 7
      %v249 = vsub.s32 1, %v248
      %v250 = vrot.slane %v180, %v249
      %251 = vrot.lane.b32.xlu0 %v246, 113
      %v252 = vpop.permute.xlu0 %251
      %253 = vrot.lane.b32.xlu0 %v250, 113
      %v254 = vpop.permute.xlu0 %253
      %vm255 = vcmask 924672
      %v256 = vsel %vm255, %v252, %v254
      %v260 = vmul.f32 %v239, %v252
      %v261 = vmul.f32 %v240, %v256
      %v262 = vmul.f32 %v241, %v254
      %266 = vrot.lane.b32.xlu0 %v260, 15
      %v267 = vpop.permute.xlu0 %266
      %268 = vrot.lane.b32.xlu0 %v261, 15
      %v269 = vpop.permute.xlu0 %268
      %270 = vrot.lane.b32.xlu0 %v262, 15
      %v271 = vpop.permute.xlu0 %270
      %vm272 = vcmask 121856
      %v273 = vsel %vm272, %v267, %v269
      %v274 = vsel %vm272, %v269, %v271
      %277 = vst [vmem:[#allocation3 + $0x20] sm:$0xff] %v273
      %278 = vst [vmem:[#allocation3 + $0x28] sm:$0xff] %v274
      %v279 = vld [vmem:[#allocation2] sm:$0xff]
      %v280 = vld [vmem:[#allocation2 + $0x8] sm:$0xff]
      %v281 = vld [vmem:[#allocation2 + $0x10] sm:$0xff]
      %282 = vrot.lane.b32.xlu0 %v188, 127
      %v283 = vpop.permute.xlu0 %282
      %284 = vrot.lane.b32.xlu0 %v192, 127
      %v285 = vpop.permute.xlu0 %284
      %vm286 = vcmask 1039360
      %v287 = vsel %vm286, %v283, %v285
      %v291 = vmul.f32 %v279, %v283
      %v292 = vmul.f32 %v280, %v287
      %v293 = vmul.f32 %v281, %v285
      %297 = vrot.lane.b32.xlu0 %v291, 1
      %v298 = vpop.permute.xlu0 %297
      %299 = vrot.lane.b32.xlu0 %v292, 1
      %v300 = vpop.permute.xlu0 %299
      %301 = vrot.lane.b32.xlu0 %v293, 1
      %v302 = vpop.permute.xlu0 %301
      %vm303 = vcmask 7168
      %v304 = vsel %vm303, %v298, %v300
      %v305 = vsel %vm303, %v300, %v302
      %308 = vst [vmem:[#allocation3 + $0x30] sm:$0xff] %v304
      %309 = vst [vmem:[#allocation3 + $0x38] sm:$0xff] %v305
      %v310 = vld [vmem:[#allocation2 + $0x8] sm:$0xff]
      %v311 = vld [vmem:[#allocation2 + $0x10] sm:$0xff]
      %312 = vst [vmem:[#allocation3 + $0x40] sm:$0xff] %v310
      %313 = vst [vmem:[#allocation3 + $0x48] sm:$0xff] %v311
      %v314 = vld [vmem:[#allocation2 + $0x8] sm:$0xff]
      %v315 = vld [vmem:[#allocation2 + $0x10] sm:$0xff]
      %v316 = vld [vmem:[#allocation2 + $0x18] sm:$0xff]
      %317 = vrot.lane.b32.xlu0 %v246, 1
      %v318 = vpop.permute.xlu0 %317
      %319 = vrot.lane.b32.xlu0 %v250, 1
      %v320 = vpop.permute.xlu0 %319
      %v321 = vsel %vm303, %v318, %v320
      %v325 = vmul.f32 %v314, %v318
      %v326 = vmul.f32 %v315, %v321
      %v327 = vmul.f32 %v316, %v320
      %331 = vrot.lane.b32.xlu0 %v325, 127
      %v332 = vpop.permute.xlu0 %331
      %333 = vrot.lane.b32.xlu0 %v326, 127
      %v334 = vpop.permute.xlu0 %333
      %335 = vrot.lane.b32.xlu0 %v327, 127
      %v336 = vpop.permute.xlu0 %335
      %v337 = vsel %vm286, %v332, %v334
      %v338 = vsel %vm286, %v334, %v336
      %341 = vst [vmem:[#allocation3 + $0x50] sm:$0xff] %v337
      %342 = vst [vmem:[#allocation3 + $0x58] sm:$0xff] %v338
      %v343 = vld [vmem:[#allocation2 + $0x8] sm:$0xff]
      %v344 = vld [vmem:[#allocation2 + $0x10] sm:$0xff]
      %v345 = vld [vmem:[#allocation2 + $0x18] sm:$0xff]
      %346 = vrot.lane.b32.xlu0 %v188, 15
      %v347 = vpop.permute.xlu0 %346
      %348 = vrot.lane.b32.xlu0 %v192, 15
      %v349 = vpop.permute.xlu0 %348
      %v350 = vsel %vm272, %v347, %v349
      %v354 = vmul.f32 %v343, %v347
      %v355 = vmul.f32 %v344, %v350
      %v356 = vmul.f32 %v345, %v349
      %360 = vrot.lane.b32.xlu0 %v354, 113
      %v361 = vpop.permute.xlu0 %360
      %362 = vrot.lane.b32.xlu0 %v355, 113
      %v363 = vpop.permute.xlu0 %362
      %364 = vrot.lane.b32.xlu0 %v356, 113
      %v365 = vpop.permute.xlu0 %364
      %v366 = vsel %vm255, %v361, %v363
      %v367 = vsel %vm255, %v363, %v365
      %370 = vst [vmem:[#allocation3 + $0x60] sm:$0xff] %v366
      %371 = vst [vmem:[#allocation3 + $0x68] sm:$0xff] %v367
      %v372 = vld [vmem:[#allocation2 + $0x8] sm:$0xff]
      %v373 = vld [vmem:[#allocation2 + $0x10] sm:$0xff]
      %v374 = vld [vmem:[#allocation2 + $0x18] sm:$0xff]
      %378 = vrot.lane.b32.xlu0 %v372, 112
      %v379 = vpop.permute.xlu0 %378
      %380 = vrot.lane.b32.xlu0 %v373, 112
      %v381 = vpop.permute.xlu0 %380
      %382 = vrot.lane.b32.xlu0 %v374, 112
      %v383 = vpop.permute.xlu0 %382
      %vm384 = vcmask 916480
      %v385 = vsel %vm384, %v379, %v381
      %v386 = vsel %vm384, %v381, %v383
      %389 = vst [vmem:[#allocation3 + $0x70] sm:$0xff] %v385
      %390 = vst [vmem:[#allocation3 + $0x78] sm:$0xff] %v386
      %v391 = vld [vmem:[#allocation2 + $0x8] sm:$0xff]
      %v392 = vld [vmem:[#allocation2 + $0x10] sm:$0xff]
      %v393 = vld [vmem:[#allocation2 + $0x18] sm:$0xff]
      %394 = vrot.lane.b32.xlu0 %v246, 17
      %v395 = vpop.permute.xlu0 %394
      %396 = vrot.lane.b32.xlu0 %v250, 17
      %v397 = vpop.permute.xlu0 %396
      %v398 = vsel %vm172, %v395, %v397
      %v402 = vmul.f32 %v391, %v395
      %v403 = vmul.f32 %v392, %v398
      %v404 = vmul.f32 %v393, %v397
      %408 = vrot.lane.b32.xlu0 %v402, 111
      %v409 = vpop.permute.xlu0 %408
      %410 = vrot.lane.b32.xlu0 %v403, 111
      %v411 = vpop.permute.xlu0 %410
      %412 = vrot.lane.b32.xlu0 %v404, 111
      %v413 = vpop.permute.xlu0 %412
      %v414 = vsel %vm197, %v409, %v411
      %v415 = vsel %vm197, %v411, %v413
      %418 = vst [vmem:[#allocation3 + $0x80] sm:$0xff] %v414
      %419 = vst [vmem:[#allocation3 + $0x88] sm:$0xff] %v415
      %v420 = vld [vmem:[%s0] sm:$0xff]
      %v421 = vld [vmem:[#allocation3] sm:$0xff]
      %v422 = vld [vmem:[#allocation3 + $0x8] sm:$0xff]
      %v423 = vld [vmem:[#allocation3 + $0x10] sm:$0xff]
      %v424 = vld [vmem:[#allocation3 + $0x18] sm:$0xff]
      %v425 = vld [vmem:[#allocation3 + $0x20] sm:$0xff]
      %v426 = vld [vmem:[#allocation3 + $0x28] sm:$0xff]
      %v427 = vld [vmem:[#allocation3 + $0x30] sm:$0xff]
      %v428 = vld [vmem:[#allocation3 + $0x38] sm:$0xff]
      %v429 = vld [vmem:[#allocation3 + $0x40] sm:$0xff]
      %v430 = vld [vmem:[#allocation3 + $0x48] sm:$0xff]
      %v431 = vld [vmem:[#allocation3 + $0x50] sm:$0xff]
      %v432 = vld [vmem:[#allocation3 + $0x58] sm:$0xff]
      %v433 = vld [vmem:[#allocation3 + $0x60] sm:$0xff]
      %v434 = vld [vmem:[#allocation3 + $0x68] sm:$0xff]
      %v435 = vld [vmem:[#allocation3 + $0x70] sm:$0xff]
      %v436 = vld [vmem:[#allocation3 + $0x78] sm:$0xff]
      %v437 = vld [vmem:[#allocation3 + $0x80] sm:$0xff]
      %v438 = vld [vmem:[#allocation3 + $0x88] sm:$0xff]
      %vm439 = vcmask 588800
      %v441 = vsel %vm439, %v420, 0
      %443 = vmatprep.subr.mxu0 %v422
      %444 = vmatpush1.msra.mxu0 %v421
      %445 = vmatprep.subr.mxu0 %v424
      %446 = vmatpush1.msra.mxu0 %v423
      %447 = vmatprep.subr.mxu0 %v426
      %448 = vmatpush1.msra.mxu0 %v425
      %449 = vmatprep.subr.mxu0 %v428
      %450 = vmatpush1.msra.mxu0 %v427
      %451 = vmatprep.subr.mxu0 %v430
      %452 = vmatpush1.msra.mxu0 %v429
      %453 = vmatprep.subr.mxu0 %v432
      %454 = vmatpush1.msra.mxu0 %v431
      %455 = vmatprep.subr.mxu0 %v434
      %456 = vmatpush1.msra.mxu0 %v433
      %457 = vmatprep.subr.mxu0 %v436
      %458 = vmatpush1.msra.mxu0 %v435
      %459 = vmatprep.subr.mxu0 %v438
      %460 = vmatpush1.msra.mxu0 %v437
      %461 = vmatprep.subr.mxu0 0.0
      %462 = vmatpush1.msra.mxu0 0.0
      %463 = vmatprep.subr.mxu0 0.0
      %464 = vmatpush1.msra.mxu0 0.0
      %465 = vmatprep.subr.mxu0 0.0
      %466 = vmatpush1.msra.mxu0 0.0
      %467 = vmatprep.subr.mxu0 0.0
      %468 = vmatpush1.msra.mxu0 0.0
      %469 = vmatprep.subr.mxu0 0.0
      %470 = vmatpush1.msra.mxu0 0.0
      %471 = vmatprep.subr.mxu0 0.0
      %472 = vmatpush1.msra.mxu0 0.0
      %473 = vmatprep.subr.mxu0 0.0
      %474 = vmatpush1.msra.mxu0 0.0
      %475 = vmatprep.subr.mxu0 0.0
      %476 = vmatpush1.msra.mxu0 0.0
      %477 = vmatprep.subr.mxu0 0.0
      %478 = vmatpush1.msra.mxu0 0.0
      %479 = vmatprep.subr.mxu0 0.0
      %480 = vmatpush1.msra.mxu0 0.0
      %481 = vmatprep.subr.mxu0 0.0
      %482 = vmatpush1.msra.mxu0 0.0
      %483 = vmatprep.subr.mxu0 0.0
      %484 = vmatpush1.msra.mxu0 0.0
      %485 = vmatprep.subr.mxu0 0.0
      %486 = vmatpush1.msra.mxu0 0.0
      %487 = vmatprep.subr.mxu0 0.0
      %488 = vmatpush1.msra.mxu0 0.0
      %489 = vmatprep.subr.mxu0 0.0
      %490 = vmatpush1.msra.mxu0 0.0
      %491 = vmatprep.subr.mxu0 0.0
      %492 = vmatpush1.msra.mxu0 0.0
      %493 = vmatprep.subr.mxu0 0.0
      %494 = vmatpush1.msra.mxu0 0.0
      %495 = vmatprep.subr.mxu0 0.0
      %496 = vmatpush1.msra.mxu0 0.0
      %497 = vmatprep.subr.mxu0 0.0
      %498 = vmatpush1.msra.mxu0 0.0
      %499 = vmatprep.subr.mxu0 0.0
      %500 = vmatpush1.msra.mxu0 0.0
      %501 = vmatprep.subr.mxu0 0.0
      %502 = vmatpush1.msra.mxu0 0.0
      %503 = vmatprep.subr.mxu0 0.0
      %504 = vmatpush1.msra.mxu0 0.0
      %505 = vmatprep.subr.mxu0 0.0
      %506 = vmatpush1.msra.mxu0 0.0
      %507 = vmatprep.mubr.f32.mxu0 0.0
      %508 = vmatmul.mubr.f32.gmra.mrb[0].mxu0 %v441
      %v509 = vpop.f32.mrb[0].mxu0
      %v510 = vadd.f32 0.0, %v509
      %v511 = vpop.f32.mrb[0].mxu0
      %v512 = vadd.f32 0.0, %v511
      %513 = vdwg.mxu0
      %514 = vst [vmem:[%s170] sm:$0xff] %v510
      %515 = vst [vmem:[%s170 + $0x8] sm:$0xff] %v512
      %p516 = scmp.lt.s32.totalorder %s14, 1
      %s517 = scalar_select %p516, %s14, 1
      %s518 = smul.addr %s517, 4
      %s519 = smul.addr %s518, 8
      %s520 = scalar_lea.vmem %s3, %s519
      // Predicated region
      $region33: #{pconv2_1.1} parent=31 // pred_check
        %p521 = pneg %p100
      $region34: #{pconv2_1.1} parent=31 // pred_check_branch
        %523 = sbr.rel (%p521) target = $region36
      $region35: #{pconv2_1.1} parent=31 // pred_region
        _
      $region36: #{pconv2_1.1} parent=31 // pred_fallthru
        _
    $region32: #{pconv2_1.1} parent=5 // pred_fallthru
      _
    %p524 = scmp.le.s32.totalorder 2, %s9
    // Predicated region
    $region37: #{pconv2_1.1} parent=5 // pred_check
      %p525 = pneg %p524
    $region38: #{pconv2_1.1} parent=5 // pred_check_branch
      %527 = sbr.rel (%p525) target = $region40
    $region39: #{pconv2_1.1} parent=5 // pred_region
      %s528 = ssub.s32 %s9, 2
      // Predicated region
      $region41: #{pconv2_1.1} parent=39 // pred_check
        %p529 = pneg %p106
      $region42: #{pconv2_1.1} parent=39 // pred_check_branch
        %531 = sbr.rel (%p529) target = $region44
      $region43: #{pconv2_1.1} parent=39 // pred_region
        %p532 = scmp.lt.s32.totalorder %s15, 1
        %s533 = scalar_select %p532, %s15, 1
        %s534 = smul.addr %s533, 4
        %s535 = smul.addr %s534, 8
        %s536 = scalar_lea.vmem %s3, %s535
      $region44: #{pconv2_1.1} parent=39 // pred_fallthru
        _
    $region40: #{pconv2_1.1} parent=5 // pred_fallthru
      _
  $region6: #{pconv2_1.1} parent=0 // loop_footer
    %s13 = sadd.s32 1, %s9
  $region7: #{pconv2_1.1} parent=0 // loop_footer_branch
    %8 = sbr.rel target = $region3
  $region8: #{pconv2_1.1} parent=0 // loop_exit
    _

</llo_original>
